<compile_context>
chip_gen: v5e
topology: v5e:2x2
jax: 0.10.0
libtpu: 0.0.40
codegen_flags: <defaults>
</compile_context>

<pallas_src>
import jax
import jax.numpy as jnp
from jax.experimental import pallas as pl
from jax.experimental.pallas import tpu as pltpu


def gb_kernel(x_ref, w_ref, o_ref):
    # x_ref: (TB, K)   w_ref: (1, K)   o_ref: (TB, 1)
    x = x_ref[...].astype(jnp.float32)            # f32 accumulate (no-op for f32 in)
    w = w_ref[...].astype(jnp.float32)            # (1, K), broadcasts over TB rows
    # VPU multiply + cross-lane reduce; kernel stays DMA-bound, MXU untouched.
    o_ref[...] = jnp.sum(x * w, axis=-1, keepdims=True)   # -> (TB, 1)


def gb_forward(x, img, *, batch_tile=512):
    """x: (B, J, H, W), img: (X=1, H, W) -> (B, 1) float32."""
    B, J, H, W = x.shape
    X = img.shape[0]
    assert X == 1, "module fixes the parameter to a single (1, H, W) image"
    M = H * W
    K = J * M

    # Free reshape (collapse of contiguous trailing dims).  2-D (B, K) puts
    # batch rows on sublanes (full 8) and K on lanes -> no J<8 sublane padding.
    x_flat = x.reshape(B, K)
    # Tile the flattened image J times along lanes so sum_j fuses into the
    # single lane reduce.  Tiny: K*4 = ~34 KB, built once in the wrapper.
    w_tiled = jnp.tile(img.reshape(X, M), (1, J))          # (1, K)

    # Batch tile: as large as comfortably fits VMEM double-buffered, clamped
    # to B.  Output block is (tb, 1); its second-to-last dim must be a
    # multiple of 8 or equal the full B, so round down to a multiple of 8.
    tb = min(batch_tile, B)
    if tb != B:
        tb = max(8, (tb // 8) * 8)
    grid = (pl.cdiv(B, tb),)

    # Double-buffered x block (lane-padded) + tiny weight + headroom; stay
    # within v7x's 64 MiB physical VMEM, raise above small default limits.
    lanes_padded = pl.cdiv(K, 128) * 128
    block_bytes = tb * lanes_padded * 4
    vmem_limit = int(min(60 << 20, max(32 << 20, 2 * block_bytes + (4 << 20))))

    return pl.pallas_call(
        gb_kernel,
        out_shape=jax.ShapeDtypeStruct((B, X), jnp.float32),
        grid=grid,
        in_specs=[
            # Tile only the leading batch axis (contiguous in HBM); last block
            # dim equals the full array dim -> (8,128) rule satisfied.
            pl.BlockSpec((tb, K), lambda i: (i, 0)),
            # Tiny weight, same block index every step (kept resident).
            pl.BlockSpec((X, K), lambda i: (0, 0)),
        ],
        out_specs=pl.BlockSpec((tb, X), lambda i: (i, 0)),
        compiler_params=pltpu.CompilerParams(
            dimension_semantics=("parallel",),   # independent batch blocks
            vmem_limit_bytes=vmem_limit,
        ),
    )(x_flat, w_tiled)


if __name__ == "__main__":
    key = jax.random.PRNGKey(0)
    k_img, k_x = jax.random.split(key)

    # Shapes implied by the module: img param (1, 46, 46); x is (B, J, 46, 46).
    B, J, H, W, X = 2, 4, 46, 46, 1

    # Deterministic synthetic "parameter" (the original was data-derived and
    # re-centered by `mean`; here we draw it deterministically instead).
    vmax, vmin = 2.1919, -1.7919
    mean = (vmin + vmax) / 2.0
    img = jax.random.uniform(k_img, (X, H, W), jnp.float32,
                             minval=vmin, maxval=vmax) - mean
    x = jax.random.normal(k_x, (B, J, H, W), jnp.float32)

    out = gb_forward(x, img)
    out = jax.block_until_ready(out)

    # Reference semantics check (torch.einsum('ijkl,xkl->ix', x, img)).
    ref = jnp.einsum("ijkl,xkl->ix", x, img)
    assert out.shape == (B, X), out.shape
    assert jnp.allclose(out, ref, rtol=1e-5, atol=1e-4), (out, ref)

    print("KERNEL_OK")
</pallas_src>

<mosaic_0001>
module attributes {stable_mosaic.version = 11 : i64} {
  func.func @gb_kernel(%arg0: i32, %arg1: memref<2x8464xf32, #tpu.memory_space<vmem>>, %arg2: memref<1x8464xf32, #tpu.memory_space<vmem>>, %arg3: memref<2x1xf32, #tpu.memory_space<vmem>>) attributes {dimension_semantics = [#tpu.dimension_semantics<parallel>], iteration_bounds = array<i64: 1>, scalar_prefetch = 0 : i64, scratch_operands = 0 : i64, tpu.core_type = #tpu.core_type<tc>, window_params = [{transform_indices = @transform_0, window_bounds = array<i64: 2, 8464>}, {pipeline_mode = #tpu.pipeline_mode<synchronous>, transform_indices = @transform_1, window_bounds = array<i64: 1, 8464>}, {transform_indices = @transform_2, window_bounds = array<i64: 2, 1>}]} {
    %c0 = arith.constant 0 : index
    %c0_0 = arith.constant 0 : index
    %0 = vector.load %arg1[%c0, %c0_0] : memref<2x8464xf32, #tpu.memory_space<vmem>>, vector<2x8464xf32>
    %c0_1 = arith.constant 0 : index
    %c0_2 = arith.constant 0 : index
    %1 = vector.load %arg2[%c0_1, %c0_2] : memref<1x8464xf32, #tpu.memory_space<vmem>>, vector<1x8464xf32>
    %2 = vector.broadcast %1 : vector<1x8464xf32> to vector<2x8464xf32>
    %3 = arith.mulf %0, %2 : vector<2x8464xf32>
    %cst = arith.constant dense<0.000000e+00> : vector<2xf32>
    %4 = vector.multi_reduction <add>, %3, %cst [1] : vector<2x8464xf32> to vector<2xf32>
    %5 = vector.shape_cast %4 : vector<2xf32> to vector<2x1xf32>
    %c0_3 = arith.constant 0 : index
    %c0_4 = arith.constant 0 : index
    %6 = vector.load %arg3[%c0_3, %c0_4] : memref<2x1xf32, #tpu.memory_space<vmem>>, vector<2x1xf32>
    tpu.vector_store %arg3[%c0_3, %c0_4], %5 {strides = array<i32>} : memref<2x1xf32, #tpu.memory_space<vmem>>, vector<2x1xf32>,
    return
  }
  func.func @transform_0(%arg0: i32) -> (i32, i32) {
    %c0_i32 = arith.constant 0 : i32
    %c0_i32_0 = arith.constant 0 : i32
    return %arg0, %c0_i32 : i32, i32
  }
  func.func @transform_1(%arg0: i32) -> (i32, i32) {
    %c0_i32 = arith.constant 0 : i32
    %c0_i32_0 = arith.constant 0 : i32
    %c0_i32_1 = arith.constant 0 : i32
    return %c0_i32, %c0_i32_0 : i32, i32
  }
  func.func @transform_2(%arg0: i32) -> (i32, i32) {
    %c0_i32 = arith.constant 0 : i32
    %c0_i32_0 = arith.constant 0 : i32
    return %arg0, %c0_i32 : i32, i32
  }
}

</mosaic_0001>

<llo_original>
// kernel: tpu_custom_call.1
$region0: #{tpu_custom_call.1}
  #allocation0 [shape = 'u32[]', space=smem, size = 0x4, offset = 0x4, fixed_abs, tag = 'smem constant byte address 0x4 - core index']
  #allocation1 [shape = 'u32[72,128]{1,0:T(1,128)}', space=vmem, size = 0x9000, scoped, tag = 'internal scratch']
  %s0 = inlined_call_operand.hbm [shape: f32[2,8464], index: 0, kind: input, shape index: {}]
  %s1 = inlined_call_operand.hbm [shape: f32[1,8464], index: 1, kind: input, shape index: {}]
  %s2 = inlined_call_operand.vmem [shape: f32[2,1], index: 2, kind: output, shape index: {}]
  %s3 = sld [smem:[#allocation0]]
  $region26: #{tpu_custom_call.1} parent=0
    _
  %s5 = ssub.s32 1, %s3
  %s6 = scalar_select 0, %s5, %s3
  $region1: #{tpu_custom_call.1} parent=0
    #allocation2 [shape = 'u8[68608]{0}', space=vmem, size = 0x10c00, scoped, tag = 'input window, operand 0, single buffered']
    #allocation3 [shape = 's32[1]{0}', space=sflag, size = 0x4, scoped, tag = 'scoped memory for tpu_custom_call.1']
    #allocation4 [shape = 'u8[34304]{0}', space=vmem, size = 0x8800, scoped, tag = 'input window, operand 1, single buffered']
    #allocation5 [shape = 's32[1]{0}', space=sflag, size = 0x4, scoped, tag = 'scoped memory for tpu_custom_call.1']
    %7 = vsyncpa [#allocation3], 0
    %8 = vsyncpa [#allocation5], 0
    // Predicated region
    $region2: #{tpu_custom_call.1} parent=1 // pred_check
      _
    $region3: #{tpu_custom_call.1} parent=1 // pred_check_branch
      %10 = sbr.rel (0) target = $region5
    $region4: #{tpu_custom_call.1} parent=1 // pred_region
      %12 = vsyncadd [#allocation3], 0
      %s14 = sshll.u32 %s0, 4
      %s15 = int_to_ptr.hbm [resolvable:$true] %s14
      %s16 = sshll.u32 [#allocation2], 4
      %s17 = int_to_ptr.vmem [resolvable:$true] %s16
      %19 = dma.hbm_to_vmem [thread:$0]  %s15, 2144, %s17, [#allocation3]
    $region5: #{tpu_custom_call.1} parent=1 // pred_fallthru
      _
    // Predicated region
    $region6: #{tpu_custom_call.1} parent=1 // pred_check
      _
    $region7: #{tpu_custom_call.1} parent=1 // pred_check_branch
      %21 = sbr.rel (0) target = $region9
    $region8: #{tpu_custom_call.1} parent=1 // pred_region
      %23 = vsyncadd [#allocation5], 0
      %s25 = sshll.u32 %s1, 4
      %s26 = int_to_ptr.hbm [resolvable:$true] %s25
      %s27 = sshll.u32 [#allocation4], 4
      %s28 = int_to_ptr.vmem [resolvable:$true] %s27
      %30 = dma.hbm_to_vmem [thread:$0]  %s26, 1072, %s28, [#allocation5]
    $region9: #{tpu_custom_call.1} parent=1 // pred_fallthru
      _
    // Predicated region
    $region10: #{tpu_custom_call.1} parent=1 // pred_check
      _
    $region11: #{tpu_custom_call.1} parent=1 // pred_check_branch
      %32 = sbr.rel (0) target = $region13
    $region12: #{tpu_custom_call.1} parent=1 // pred_region
      %34 = dma.done [#allocation3], 2144
    $region13: #{tpu_custom_call.1} parent=1 // pred_fallthru
      _
    // Predicated region
    $region14: #{tpu_custom_call.1} parent=1 // pred_check
      _
    $region15: #{tpu_custom_call.1} parent=1 // pred_check_branch
      %36 = sbr.rel (0) target = $region17
    $region16: #{tpu_custom_call.1} parent=1 // pred_region
      %38 = dma.done [#allocation5], 1072
    $region17: #{tpu_custom_call.1} parent=1 // pred_fallthru
      _
    %v39 = vld [vmem:[#allocation2] sm:$0xff]
    %v40 = vld [vmem:[#allocation2 + $0x8] sm:$0xff]
    %v41 = vld [vmem:[#allocation2 + $0x10] sm:$0xff]
    %v42 = vld [vmem:[#allocation2 + $0x18] sm:$0xff]
    %v43 = vld [vmem:[#allocation2 + $0x20] sm:$0xff]
    %v44 = vld [vmem:[#allocation2 + $0x28] sm:$0xff]
    %v45 = vld [vmem:[#allocation2 + $0x30] sm:$0xff]
    %v46 = vld [vmem:[#allocation2 + $0x38] sm:$0xff]
    %v47 = vld [vmem:[#allocation2 + $0x40] sm:$0xff]
    %v48 = vld [vmem:[#allocation2 + $0x48] sm:$0xff]
    %v49 = vld [vmem:[#allocation2 + $0x50] sm:$0xff]
    %v50 = vld [vmem:[#allocation2 + $0x58] sm:$0xff]
    %v51 = vld [vmem:[#allocation2 + $0x60] sm:$0xff]
    %v52 = vld [vmem:[#allocation2 + $0x68] sm:$0xff]
    %v53 = vld [vmem:[#allocation2 + $0x70] sm:$0xff]
    %v54 = vld [vmem:[#allocation2 + $0x78] sm:$0xff]
    %v55 = vld [vmem:[#allocation2 + $0x80] sm:$0x3f]
    %v56 = vld [vmem:[#allocation4] sm:$0xff]
    %v57 = vld [vmem:[#allocation4 + $0x8] sm:$0xff]
    %v58 = vld [vmem:[#allocation4 + $0x10] sm:$0xff]
    %v59 = vld [vmem:[#allocation4 + $0x18] sm:$0xff]
    %v60 = vld [vmem:[#allocation4 + $0x20] sm:$0xff]
    %v61 = vld [vmem:[#allocation4 + $0x28] sm:$0xff]
    %v62 = vld [vmem:[#allocation4 + $0x30] sm:$0xff]
    %v63 = vld [vmem:[#allocation4 + $0x38] sm:$0xff]
    %v64 = vld [vmem:[#allocation4 + $0x40] sm:$0x7]
    %v74 = vperm.slane %v56, 0
    %v75 = vperm.slane %v56, 1
    %v76 = vperm.slane %v56, 2
    %v77 = vperm.slane %v56, 3
    %v78 = vperm.slane %v56, 4
    %v79 = vperm.slane %v56, 5
    %v80 = vperm.slane %v56, 6
    %v81 = vperm.slane %v56, 7
    %v82 = vperm.slane %v57, 0
    %v83 = vperm.slane %v57, 1
    %v84 = vperm.slane %v57, 2
    %v85 = vperm.slane %v57, 3
    %v86 = vperm.slane %v57, 4
    %v87 = vperm.slane %v57, 5
    %v88 = vperm.slane %v57, 6
    %v89 = vperm.slane %v57, 7
    %v90 = vperm.slane %v58, 0
    %v91 = vperm.slane %v58, 1
    %v92 = vperm.slane %v58, 2
    %v93 = vperm.slane %v58, 3
    %v94 = vperm.slane %v58, 4
    %v95 = vperm.slane %v58, 5
    %v96 = vperm.slane %v58, 6
    %v97 = vperm.slane %v58, 7
    %v98 = vperm.slane %v59, 0
    %v99 = vperm.slane %v59, 1
    %v100 = vperm.slane %v59, 2
    %v101 = vperm.slane %v59, 3
    %v102 = vperm.slane %v59, 4
    %v103 = vperm.slane %v59, 5
    %v104 = vperm.slane %v59, 6
    %v105 = vperm.slane %v59, 7
    %v106 = vperm.slane %v60, 0
    %v107 = vperm.slane %v60, 1
    %v108 = vperm.slane %v60, 2
    %v109 = vperm.slane %v60, 3
    %v110 = vperm.slane %v60, 4
    %v111 = vperm.slane %v60, 5
    %v112 = vperm.slane %v60, 6
    %v113 = vperm.slane %v60, 7
    %v114 = vperm.slane %v61, 0
    %v115 = vperm.slane %v61, 1
    %v116 = vperm.slane %v61, 2
    %v117 = vperm.slane %v61, 3
    %v118 = vperm.slane %v61, 4
    %v119 = vperm.slane %v61, 5
    %v120 = vperm.slane %v61, 6
    %v121 = vperm.slane %v61, 7
    %v122 = vperm.slane %v62, 0
    %v123 = vperm.slane %v62, 1
    %v124 = vperm.slane %v62, 2
    %v125 = vperm.slane %v62, 3
    %v126 = vperm.slane %v62, 4
    %v127 = vperm.slane %v62, 5
    %v128 = vperm.slane %v62, 6
    %v129 = vperm.slane %v62, 7
    %v130 = vperm.slane %v63, 0
    %v131 = vperm.slane %v63, 1
    %v132 = vperm.slane %v63, 2
    %v133 = vperm.slane %v63, 3
    %v134 = vperm.slane %v63, 4
    %v135 = vperm.slane %v63, 5
    %v136 = vperm.slane %v63, 6
    %v137 = vperm.slane %v63, 7
    %v138 = vperm.slane %v64, 0
    %v139 = vperm.slane %v64, 1
    %v140 = vperm.slane %v64, 2
    %v141 = vrot.slane %v75, 6
    %v142 = vrot.slane %v76, 4
    %v143 = vrot.slane %v77, 2
    %v144 = vrot.slane %v79, 6
    %v145 = vrot.slane %v80, 4
    %v146 = vrot.slane %v81, 2
    %v147 = vrot.slane %v83, 6
    %v148 = vrot.slane %v84, 4
    %v149 = vrot.slane %v85, 2
    %v150 = vrot.slane %v87, 6
    %v151 = vrot.slane %v88, 4
    %v152 = vrot.slane %v89, 2
    %v153 = vrot.slane %v91, 6
    %v154 = vrot.slane %v92, 4
    %v155 = vrot.slane %v93, 2
    %v156 = vrot.slane %v95, 6
    %v157 = vrot.slane %v96, 4
    %v158 = vrot.slane %v97, 2
    %v159 = vrot.slane %v99, 6
    %v160 = vrot.slane %v100, 4
    %v161 = vrot.slane %v101, 2
    %v162 = vrot.slane %v103, 6
    %v163 = vrot.slane %v104, 4
    %v164 = vrot.slane %v105, 2
    %v165 = vrot.slane %v107, 6
    %v166 = vrot.slane %v108, 4
    %v167 = vrot.slane %v109, 2
    %v168 = vrot.slane %v111, 6
    %v169 = vrot.slane %v112, 4
    %v170 = vrot.slane %v113, 2
    %v171 = vrot.slane %v115, 6
    %v172 = vrot.slane %v116, 4
    %v173 = vrot.slane %v117, 2
    %v174 = vrot.slane %v119, 6
    %v175 = vrot.slane %v120, 4
    %v176 = vrot.slane %v121, 2
    %v177 = vrot.slane %v123, 6
    %v178 = vrot.slane %v124, 4
    %v179 = vrot.slane %v125, 2
    %v180 = vrot.slane %v127, 6
    %v181 = vrot.slane %v128, 4
    %v182 = vrot.slane %v129, 2
    %v183 = vrot.slane %v131, 6
    %v184 = vrot.slane %v132, 4
    %v185 = vrot.slane %v133, 2
    %v186 = vrot.slane %v135, 6
    %v187 = vrot.slane %v136, 4
    %v188 = vrot.slane %v137, 2
    %v189 = vrot.slane %v139, 6
    %v190 = vrot.slane %v140, 4
    %vm191 = vcmask 1041408
    %v192 = vsel %vm191, %v74, %v141
    %vm193 = vcmask 1045508
    %v194 = vsel %vm193, %v142, %v143
    %vm195 = vcmask 1043456
    %v196 = vsel %vm195, %v192, %v194
    %v197 = vsel %vm191, %v78, %v144
    %v198 = vsel %vm193, %v145, %v146
    %v199 = vsel %vm195, %v197, %v198
    %v200 = vsel %vm191, %v82, %v147
    %v201 = vsel %vm193, %v148, %v149
    %v202 = vsel %vm195, %v200, %v201
    %v203 = vsel %vm191, %v86, %v150
    %v204 = vsel %vm193, %v151, %v152
    %v205 = vsel %vm195, %v203, %v204
    %v206 = vsel %vm191, %v90, %v153
    %v207 = vsel %vm193, %v154, %v155
    %v208 = vsel %vm195, %v206, %v207
    %v209 = vsel %vm191, %v94, %v156
    %v210 = vsel %vm193, %v157, %v158
    %v211 = vsel %vm195, %v209, %v210
    %v212 = vsel %vm191, %v98, %v159
    %v213 = vsel %vm193, %v160, %v161
    %v214 = vsel %vm195, %v212, %v213
    %v215 = vsel %vm191, %v102, %v162
    %v216 = vsel %vm193, %v163, %v164
    %v217 = vsel %vm195, %v215, %v216
    %v218 = vsel %vm191, %v106, %v165
    %v219 = vsel %vm193, %v166, %v167
    %v220 = vsel %vm195, %v218, %v219
    %v221 = vsel %vm191, %v110, %v168
    %v222 = vsel %vm193, %v169, %v170
    %v223 = vsel %vm195, %v221, %v222
    %v224 = vsel %vm191, %v114, %v171
    %v225 = vsel %vm193, %v172, %v173
    %v226 = vsel %vm195, %v224, %v225
    %v227 = vsel %vm191, %v118, %v174
    %v228 = vsel %vm193, %v175, %v176
    %v229 = vsel %vm195, %v227, %v228
    %v230 = vsel %vm191, %v122, %v177
    %v231 = vsel %vm193, %v178, %v179
    %v232 = vsel %vm195, %v230, %v231
    %v233 = vsel %vm191, %v126, %v180
    %v234 = vsel %vm193, %v181, %v182
    %v235 = vsel %vm195, %v233, %v234
    %v236 = vsel %vm191, %v130, %v183
    %v237 = vsel %vm193, %v184, %v185
    %v238 = vsel %vm195, %v236, %v237
    %v239 = vsel %vm191, %v134, %v186
    %v240 = vsel %vm193, %v187, %v188
    %v241 = vsel %vm195, %v239, %v240
    %v242 = vsel %vm191, %v138, %v189
    %v243 = vsel %vm195, %v242, %v190
    %v261 = vmul.f32 %v39, %v196
    %v262 = vmul.f32 %v40, %v199
    %v263 = vmul.f32 %v41, %v202
    %v264 = vmul.f32 %v42, %v205
    %v265 = vmul.f32 %v43, %v208
    %v266 = vmul.f32 %v44, %v211
    %v267 = vmul.f32 %v45, %v214
    %v268 = vmul.f32 %v46, %v217
    %v269 = vmul.f32 %v47, %v220
    %v270 = vmul.f32 %v48, %v223
    %v271 = vmul.f32 %v49, %v226
    %v272 = vmul.f32 %v50, %v229
    %v273 = vmul.f32 %v51, %v232
    %v274 = vmul.f32 %v52, %v235
    %v275 = vmul.f32 %v53, %v238
    %v276 = vmul.f32 %v54, %v241
    %v277 = vmul.f32 %v55, %v243
    %295 = vst [vmem:[#allocation1] ss:$4 sm:$0xff] %v261
    %s296 = scalar_lea.vmem [#allocation1], 32
    %297 = vst [vmem:[%s296] ss:$4 sm:$0xff] %v262
    %v298 = vld.sshfl [vmem:[#allocation1] sm:$0xff pattern:$0x73625140]
    %v299 = vld.sshfl [vmem:[#allocation1 + $0x8] sm:$0xff pattern:$0x73625140]
    %v300 = vld.sshfl [vmem:[#allocation1 + $0x10] sm:$0xff pattern:$0x73625140]
    %v301 = vld.sshfl [vmem:[#allocation1 + $0x18] sm:$0xff pattern:$0x73625140]
    %v302 = vld.sshfl [vmem:[#allocation1 + $0x20] sm:$0xff pattern:$0x73625140]
    %v303 = vld.sshfl [vmem:[#allocation1 + $0x28] sm:$0xff pattern:$0x73625140]
    %v304 = vld.sshfl [vmem:[#allocation1 + $0x30] sm:$0xff pattern:$0x73625140]
    %v305 = vld.sshfl [vmem:[#allocation1 + $0x38] sm:$0xff pattern:$0x73625140]
    %306 = vst [vmem:[#allocation1] ss:$4 sm:$0xff] %v263
    %307 = vst [vmem:[%s296] ss:$4 sm:$0xff] %v264
    %v308 = vld.sshfl [vmem:[#allocation1] sm:$0xff pattern:$0x73625140]
    %v309 = vld.sshfl [vmem:[#allocation1 + $0x8] sm:$0xff pattern:$0x73625140]
    %v310 = vld.sshfl [vmem:[#allocation1 + $0x10] sm:$0xff pattern:$0x73625140]
    %v311 = vld.sshfl [vmem:[#allocation1 + $0x18] sm:$0xff pattern:$0x73625140]
    %v312 = vld.sshfl [vmem:[#allocation1 + $0x20] sm:$0xff pattern:$0x73625140]
    %v313 = vld.sshfl [vmem:[#allocation1 + $0x28] sm:$0xff pattern:$0x73625140]
    %v314 = vld.sshfl [vmem:[#allocation1 + $0x30] sm:$0xff pattern:$0x73625140]
    %v315 = vld.sshfl [vmem:[#allocation1 + $0x38] sm:$0xff pattern:$0x73625140]
    %316 = vst [vmem:[#allocation1] ss:$4 sm:$0xff] %v265
    %317 = vst [vmem:[%s296] ss:$4 sm:$0xff] %v266
    %v318 = vld.sshfl [vmem:[#allocation1] sm:$0xff pattern:$0x73625140]
    %v319 = vld.sshfl [vmem:[#allocation1 + $0x8] sm:$0xff pattern:$0x73625140]
    %v320 = vld.sshfl [vmem:[#allocation1 + $0x10] sm:$0xff pattern:$0x73625140]
    %v321 = vld.sshfl [vmem:[#allocation1 + $0x18] sm:$0xff pattern:$0x73625140]
    %v322 = vld.sshfl [vmem:[#allocation1 + $0x20] sm:$0xff pattern:$0x73625140]
    %v323 = vld.sshfl [vmem:[#allocation1 + $0x28] sm:$0xff pattern:$0x73625140]
    %v324 = vld.sshfl [vmem:[#allocation1 + $0x30] sm:$0xff pattern:$0x73625140]
    %v325 = vld.sshfl [vmem:[#allocation1 + $0x38] sm:$0xff pattern:$0x73625140]
    %326 = vst [vmem:[#allocation1] ss:$4 sm:$0xff] %v267
    %327 = vst [vmem:[%s296] ss:$4 sm:$0xff] %v268
    %v328 = vld.sshfl [vmem:[#allocation1] sm:$0xff pattern:$0x73625140]
    %v329 = vld.sshfl [vmem:[#allocation1 + $0x8] sm:$0xff pattern:$0x73625140]
    %v330 = vld.sshfl [vmem:[#allocation1 + $0x10] sm:$0xff pattern:$0x73625140]
    %v331 = vld.sshfl [vmem:[#allocation1 + $0x18] sm:$0xff pattern:$0x73625140]
    %v332 = vld.sshfl [vmem:[#allocation1 + $0x20] sm:$0xff pattern:$0x73625140]
    %v333 = vld.sshfl [vmem:[#allocation1 + $0x28] sm:$0xff pattern:$0x73625140]
    %v334 = vld.sshfl [vmem:[#allocation1 + $0x30] sm:$0xff pattern:$0x73625140]
    %v335 = vld.sshfl [vmem:[#allocation1 + $0x38] sm:$0xff pattern:$0x73625140]
    %336 = vst [vmem:[#allocation1] ss:$4 sm:$0xff] %v269
    %337 = vst [vmem:[%s296] ss:$4 sm:$0xff] %v270
    %v338 = vld.sshfl [vmem:[#allocation1] sm:$0xff pattern:$0x73625140]
    %v339 = vld.sshfl [vmem:[#allocation1 + $0x8] sm:$0xff pattern:$0x73625140]
    %v340 = vld.sshfl [vmem:[#allocation1 + $0x10] sm:$0xff pattern:$0x73625140]
    %v341 = vld.sshfl [vmem:[#allocation1 + $0x18] sm:$0xff pattern:$0x73625140]
    %v342 = vld.sshfl [vmem:[#allocation1 + $0x20] sm:$0xff pattern:$0x73625140]
    %v343 = vld.sshfl [vmem:[#allocation1 + $0x28] sm:$0xff pattern:$0x73625140]
    %v344 = vld.sshfl [vmem:[#allocation1 + $0x30] sm:$0xff pattern:$0x73625140]
    %v345 = vld.sshfl [vmem:[#allocation1 + $0x38] sm:$0xff pattern:$0x73625140]
    %346 = vst [vmem:[#allocation1] ss:$4 sm:$0xff] %v271
    %347 = vst [vmem:[%s296] ss:$4 sm:$0xff] %v272
    %v348 = vld.sshfl [vmem:[#allocation1] sm:$0xff pattern:$0x73625140]
    %v349 = vld.sshfl [vmem:[#allocation1 + $0x8] sm:$0xff pattern:$0x73625140]
    %v350 = vld.sshfl [vmem:[#allocation1 + $0x10] sm:$0xff pattern:$0x73625140]
    %v351 = vld.sshfl [vmem:[#allocation1 + $0x18] sm:$0xff pattern:$0x73625140]
    %v352 = vld.sshfl [vmem:[#allocation1 + $0x20] sm:$0xff pattern:$0x73625140]
    %v353 = vld.sshfl [vmem:[#allocation1 + $0x28] sm:$0xff pattern:$0x73625140]
    %v354 = vld.sshfl [vmem:[#allocation1 + $0x30] sm:$0xff pattern:$0x73625140]
    %v355 = vld.sshfl [vmem:[#allocation1 + $0x38] sm:$0xff pattern:$0x73625140]
    %356 = vst [vmem:[#allocation1] ss:$4 sm:$0xff] %v273
    %357 = vst [vmem:[%s296] ss:$4 sm:$0xff] %v274
    %v358 = vld.sshfl [vmem:[#allocation1] sm:$0xff pattern:$0x73625140]
    %v359 = vld.sshfl [vmem:[#allocation1 + $0x8] sm:$0xff pattern:$0x73625140]
    %v360 = vld.sshfl [vmem:[#allocation1 + $0x10] sm:$0xff pattern:$0x73625140]
    %v361 = vld.sshfl [vmem:[#allocation1 + $0x18] sm:$0xff pattern:$0x73625140]
    %v362 = vld.sshfl [vmem:[#allocation1 + $0x20] sm:$0xff pattern:$0x73625140]
    %v363 = vld.sshfl [vmem:[#allocation1 + $0x28] sm:$0xff pattern:$0x73625140]
    %v364 = vld.sshfl [vmem:[#allocation1 + $0x30] sm:$0xff pattern:$0x73625140]
    %v365 = vld.sshfl [vmem:[#allocation1 + $0x38] sm:$0xff pattern:$0x73625140]
    %366 = vst [vmem:[#allocation1] ss:$4 sm:$0xff] %v275
    %367 = vst [vmem:[%s296] ss:$4 sm:$0xff] %v276
    %v368 = vld.sshfl [vmem:[#allocation1] sm:$0xff pattern:$0x73625140]
    %v369 = vld.sshfl [vmem:[#allocation1 + $0x8] sm:$0xff pattern:$0x73625140]
    %v370 = vld.sshfl [vmem:[#allocation1 + $0x10] sm:$0xff pattern:$0x73625140]
    %v371 = vld.sshfl [vmem:[#allocation1 + $0x18] sm:$0xff pattern:$0x73625140]
    %v372 = vld.sshfl [vmem:[#allocation1 + $0x20] sm:$0xff pattern:$0x73625140]
    %v373 = vld.sshfl [vmem:[#allocation1 + $0x28] sm:$0xff pattern:$0x73625140]
    %v374 = vld.sshfl [vmem:[#allocation1 + $0x30] sm:$0xff pattern:$0x73625140]
    %v375 = vld.sshfl [vmem:[#allocation1 + $0x38] sm:$0xff pattern:$0x73625140]
    %376 = vst [vmem:[#allocation1] ss:$4 sm:$0xff] %v277
    %v377 = vld.sshfl [vmem:[#allocation1] sm:$0xff pattern:$0x73625140]
    %v378 = vld.sshfl [vmem:[#allocation1 + $0x8] sm:$0xff pattern:$0x73625140]
    %v379 = vld.sshfl [vmem:[#allocation1 + $0x10] sm:$0xff pattern:$0x73625140]
    %v447 = vsel %vm191, %v298, 0.0
    %v448 = vsel %vm191, %v299, 0.0
    %v449 = vadd.f32 %v447, %v448
    %v450 = vsel %vm191, %v300, 0.0
    %v451 = vadd.f32 %v449, %v450
    %v452 = vsel %vm191, %v301, 0.0
    %v453 = vadd.f32 %v451, %v452
    %v454 = vsel %vm191, %v302, 0.0
    %v455 = vadd.f32 %v453, %v454
    %v456 = vsel %vm191, %v303, 0.0
    %v457 = vadd.f32 %v455, %v456
    %v458 = vsel %vm191, %v304, 0.0
    %v459 = vadd.f32 %v457, %v458
    %v460 = vsel %vm191, %v305, 0.0
    %v461 = vadd.f32 %v459, %v460
    %v462 = vsel %vm191, %v308, 0.0
    %v463 = vadd.f32 %v461, %v462
    %v464 = vsel %vm191, %v309, 0.0
    %v465 = vadd.f32 %v463, %v464
    %v466 = vsel %vm191, %v310, 0.0
    %v467 = vadd.f32 %v465, %v466
    %v468 = vsel %vm191, %v311, 0.0
    %v469 = vadd.f32 %v467, %v468
    %v470 = vsel %vm191, %v312, 0.0
    %v471 = vadd.f32 %v469, %v470
    %v472 = vsel %vm191, %v313, 0.0
    %v473 = vadd.f32 %v471, %v472
    %v474 = vsel %vm191, %v314, 0.0
    %v475 = vadd.f32 %v473, %v474
    %v476 = vsel %vm191, %v315, 0.0
    %v477 = vadd.f32 %v475, %v476
    %v478 = vsel %vm191, %v318, 0.0
    %v479 = vadd.f32 %v477, %v478
    %v480 = vsel %vm191, %v319, 0.0
    %v481 = vadd.f32 %v479, %v480
    %v482 = vsel %vm191, %v320, 0.0
    %v483 = vadd.f32 %v481, %v482
    %v484 = vsel %vm191, %v321, 0.0
    %v485 = vadd.f32 %v483, %v484
    %v486 = vsel %vm191, %v322, 0.0
    %v487 = vadd.f32 %v485, %v486
    %v488 = vsel %vm191, %v323, 0.0
    %v489 = vadd.f32 %v487, %v488
    %v490 = vsel %vm191, %v324, 0.0
    %v491 = vadd.f32 %v489, %v490
    %v492 = vsel %vm191, %v325, 0.0
    %v493 = vadd.f32 %v491, %v492
    %v494 = vsel %vm191, %v328, 0.0
    %v495 = vadd.f32 %v493, %v494
    %v496 = vsel %vm191, %v329, 0.0
    %v497 = vadd.f32 %v495, %v496
    %v498 = vsel %vm191, %v330, 0.0
    %v499 = vadd.f32 %v497, %v498
    %v500 = vsel %vm191, %v331, 0.0
    %v501 = vadd.f32 %v499, %v500
    %v502 = vsel %vm191, %v332, 0.0
    %v503 = vadd.f32 %v501, %v502
    %v504 = vsel %vm191, %v333, 0.0
    %v505 = vadd.f32 %v503, %v504
    %v506 = vsel %vm191, %v334, 0.0
    %v507 = vadd.f32 %v505, %v506
    %v508 = vsel %vm191, %v335, 0.0
    %v509 = vadd.f32 %v507, %v508
    %v510 = vsel %vm191, %v338, 0.0
    %v511 = vadd.f32 %v509, %v510
    %v512 = vsel %vm191, %v339, 0.0
    %v513 = vadd.f32 %v511, %v512
    %v514 = vsel %vm191, %v340, 0.0
    %v515 = vadd.f32 %v513, %v514
    %v516 = vsel %vm191, %v341, 0.0
    %v517 = vadd.f32 %v515, %v516
    %v518 = vsel %vm191, %v342, 0.0
    %v519 = vadd.f32 %v517, %v518
    %v520 = vsel %vm191, %v343, 0.0
    %v521 = vadd.f32 %v519, %v520
    %v522 = vsel %vm191, %v344, 0.0
    %v523 = vadd.f32 %v521, %v522
    %v524 = vsel %vm191, %v345, 0.0
    %v525 = vadd.f32 %v523, %v524
    %v526 = vsel %vm191, %v348, 0.0
    %v527 = vadd.f32 %v525, %v526
    %v528 = vsel %vm191, %v349, 0.0
    %v529 = vadd.f32 %v527, %v528
    %v530 = vsel %vm191, %v350, 0.0
    %v531 = vadd.f32 %v529, %v530
    %v532 = vsel %vm191, %v351, 0.0
    %v533 = vadd.f32 %v531, %v532
    %v534 = vsel %vm191, %v352, 0.0
    %v535 = vadd.f32 %v533, %v534
    %v536 = vsel %vm191, %v353, 0.0
    %v537 = vadd.f32 %v535, %v536
    %v538 = vsel %vm191, %v354, 0.0
    %v539 = vadd.f32 %v537, %v538
    %v540 = vsel %vm191, %v355, 0.0
    %v541 = vadd.f32 %v539, %v540
    %v542 = vsel %vm191, %v358, 0.0
    %v543 = vadd.f32 %v541, %v542
    %v544 = vsel %vm191, %v359, 0.0
    %v545 = vadd.f32 %v543, %v544
    %v546 = vsel %vm191, %v360, 0.0
    %v547 = vadd.f32 %v545, %v546
    %v548 = vsel %vm191, %v361, 0.0
    %v549 = vadd.f32 %v547, %v548
    %v550 = vsel %vm191, %v362, 0.0
    %v551 = vadd.f32 %v549, %v550
    %v552 = vsel %vm191, %v363, 0.0
    %v553 = vadd.f32 %v551, %v552
    %v554 = vsel %vm191, %v364, 0.0
    %v555 = vadd.f32 %v553, %v554
    %v556 = vsel %vm191, %v365, 0.0
    %v557 = vadd.f32 %v555, %v556
    %v558 = vsel %vm191, %v368, 0.0
    %v559 = vadd.f32 %v557, %v558
    %v560 = vsel %vm191, %v369, 0.0
    %v561 = vadd.f32 %v559, %v560
    %v562 = vsel %vm191, %v370, 0.0
    %v563 = vadd.f32 %v561, %v562
    %v564 = vsel %vm191, %v371, 0.0
    %v565 = vadd.f32 %v563, %v564
    %v566 = vsel %vm191, %v372, 0.0
    %v567 = vadd.f32 %v565, %v566
    %v568 = vsel %vm191, %v373, 0.0
    %v569 = vadd.f32 %v567, %v568
    %v570 = vsel %vm191, %v374, 0.0
    %v571 = vadd.f32 %v569, %v570
    %v572 = vsel %vm191, %v375, 0.0
    %v573 = vadd.f32 %v571, %v572
    %v574 = vsel %vm191, %v377, 0.0
    %v575 = vadd.f32 %v573, %v574
    %v576 = vsel %vm191, %v378, 0.0
    %v577 = vadd.f32 %v575, %v576
    %vm578 = vcmask 123904
    %v579 = vsel %vm578, %v379, 0.0
    %v580 = vadd.f32 %v577, %v579
    %581 = vadd.xlane.f32.xlu0 %v580
    %v582 = vpop.xlane.xlu0 %581
    %vm583 = vcmask 1024
    %584 = vst.msk [vmem:[%s2] sm:$0x3] %vm583, %v582
    // Predicated region
    $region18: #{tpu_custom_call.1} parent=1 // pred_check
      _
    $region19: #{tpu_custom_call.1} parent=1 // pred_check_branch
      %586 = sbr.rel (0) target = $region21
    $region20: #{tpu_custom_call.1} parent=1 // pred_region
      _
    $region21: #{tpu_custom_call.1} parent=1 // pred_fallthru
      _
    // Predicated region
    $region22: #{tpu_custom_call.1} parent=1 // pred_check
      _
    $region23: #{tpu_custom_call.1} parent=1 // pred_check_branch
      %588 = sbr.rel (0) target = $region25
    $region24: #{tpu_custom_call.1} parent=1 // pred_region
      _
    $region25: #{tpu_custom_call.1} parent=1 // pred_fallthru
      _
    %589 = vsyncpa [#allocation3], 1
    %590 = vsyncpa [#allocation5], 1

</llo_original>
